<compile_context>
chip_gen: v7x
topology: tpu7x:2x2x1
jax: 0.10.0
libtpu: 0.0.40
codegen_flags: <defaults>
</compile_context>

<pallas_src>
import math
from functools import partial

import jax
import jax.numpy as jnp
from jax.experimental import pallas as pl
from jax.experimental.pallas import tpu as pltpu


def _round_up(x, m):
    return ((x + m - 1) // m) * m


# ----------------------------- Pallas kernel ------------------------------ #
def _hilp_forward_kernel(inv_h, pad_h, z_scale, ln_eps,
                         goal_ref, w0_ref, b0_ref, g_ref, beta_ref,
                         w1_ref, b1_ref, w2_ref, b2_ref, mean_ref,
                         out_ref):
    """One batch tile of the forward pass; all parameters VMEM-resident.

    The hidden dim is zero-padded to a multiple of 128 by the wrapper; padded
    entries of every weight/bias/gamma/beta are EXACTLY zero, so padded
    activations stay exactly zero and the LayerNorm correction below is exact.
    obs / z_dim are streamed at their true widths (no lane padding).
    """
    cdt = w0_ref.dtype                                   # matmul compute dtype (bf16 default)
    x = goal_ref[...].astype(cdt)                        # [Tb, Obs]

    # Layer 0: Linear -> LayerNorm(true width H) -> ReLU
    h = jnp.dot(x, w0_ref[...], preferred_element_type=jnp.float32)   # [Tb, Hp]
    h = h + b0_ref[...]
    # Padded columns of h are exactly 0, so over the padded width:
    #   sum(h)          == true sum
    #   sum((h - mu)^2) == true sum + pad_h * mu^2   (centered form -> stable)
    mu = jnp.sum(h, axis=-1, keepdims=True) * inv_h
    d = h - mu
    var = (jnp.sum(d * d, axis=-1, keepdims=True) - pad_h * (mu * mu)) * inv_h
    h = d * jax.lax.rsqrt(var + ln_eps)
    h = h * g_ref[...] + beta_ref[...]     # padded gamma/beta == 0 re-zero padded lanes
    h = jnp.maximum(h, 0.0)

    # Layer 1: Linear + ReLU
    h = jnp.dot(h.astype(cdt), w1_ref[...], preferred_element_type=jnp.float32)
    h = jnp.maximum(h + b1_ref[...], 0.0)

    # Output layer: Linear -> z  (true z_dim width)
    z = jnp.dot(h.astype(cdt), w2_ref[...], preferred_element_type=jnp.float32)
    z = z + b2_ref[...]

    # sqrt(z_dim) * F.normalize(z, dim=1)   (torch clamps ||z||_2 at 1e-12)
    sumsq = jnp.sum(z * z, axis=-1, keepdims=True)
    inv = z_scale * jax.lax.rsqrt(jnp.maximum(sumsq, 1e-24))
    # phi = z - running_mean
    out_ref[...] = (z * inv - mean_ref[...]).astype(out_ref.dtype)


# --------------------------- Parameter preparation -------------------------- #
def prepare_hilp_params(params, running_mean, *, z_dim, ln_eps=1e-5,
                        compute_dtype=jnp.bfloat16, lane=128):
    """Pad + cast the trunk parameters ONCE; cache the result across calls.

    Invariant (required for kernel exactness): every padded entry is exactly
    zero — guaranteed here by jnp.pad.
    """
    w0, b0, g, beta, w1, b1, w2, b2 = params
    obs, hid = w0.shape
    assert w2.shape[1] == z_dim, "w2 output width must equal z_dim"
    hid_p = _round_up(hid, lane)

    def pad_mat(a, rows, cols, dt):
        a = jnp.asarray(a, dt)
        return jnp.pad(a, ((0, rows - a.shape[0]), (0, cols - a.shape[1])))

    def pad_row(a, cols, dt=jnp.float32):
        a = jnp.asarray(a, dt).reshape(1, -1)
        return jnp.pad(a, ((0, 0), (0, cols - a.shape[1])))

    return dict(
        w0=pad_mat(w0, obs, hid_p, compute_dtype),
        b0=pad_row(b0, hid_p),
        gamma=pad_row(g, hid_p),
        beta=pad_row(beta, hid_p),
        w1=pad_mat(w1, hid_p, hid_p, compute_dtype),
        b1=pad_row(b1, hid_p),
        w2=pad_mat(w2, hid_p, z_dim, compute_dtype),
        b2=pad_row(b2, z_dim),
        running_mean=pad_row(running_mean, z_dim),
        obs=int(obs), hid=int(hid), hid_p=int(hid_p), z_dim=int(z_dim),
        ln_eps=float(ln_eps),
    )


# ------------------------------- Forward wrapper ---------------------------- #
_WEIGHT_KEYS = ("w0", "b0", "gamma", "beta", "w1", "b1", "w2", "b2", "running_mean")


def hilp_features_forward(goal, prepared, *, tile_b=256, out_dtype=jnp.float32):
    """goal: [B, obs_dim] -> phi: [B, z_dim].  `prepared` from prepare_hilp_params."""
    obs, hid = prepared["obs"], prepared["hid"]
    hid_p, zd = prepared["hid_p"], prepared["z_dim"]
    ln_eps = prepared["ln_eps"]

    B, obs_in = goal.shape
    assert obs_in == obs, "goal feature width mismatch with prepared params"

    weight_args = [prepared[k] for k in _WEIGHT_KEYS]
    weight_shapes = [tuple(a.shape) for a in weight_args]
    # Worst case (double-buffered) resident parameter bytes.
    weight_bytes = 2 * sum(int(a.size) * a.dtype.itemsize for a in weight_args)

    out_itemsize = jnp.dtype(out_dtype).itemsize
    goal_itemsize = goal.dtype.itemsize

    def _stream_scratch_bytes(t):
        # double-buffered goal/out tiles + rough f32 activation scratch.
        return (2 * t * obs * goal_itemsize
                + 2 * t * zd * out_itemsize
                + 6 * t * hid_p * 4)

    # Tile selection: at least 2 grid steps when the batch allows it (feeds
    # both v7x TensorCores), then shrink until the per-core VMEM budget holds.
    half = _round_up(max((B + 1) // 2, 8), 8)
    tb = min(_round_up(tile_b, 8), half)
    budget = 44 * 1024 * 1024          # conservative per-core budget (fits v7x 64 MiB)
    while tb > 8 and weight_bytes + _stream_scratch_bytes(tb) > budget:
        tb = max(8, _round_up(tb // 2, 8))

    b_pad = _round_up(B, tb)
    goal_in = goal if b_pad == B else jnp.pad(goal, ((0, b_pad - B), (0, 0)))
    grid = (b_pad // tb,)

    kernel = partial(_hilp_forward_kernel,
                     1.0 / float(hid), float(hid_p - hid),
                     float(math.sqrt(zd)), float(ln_eps))

    goal_spec = pl.BlockSpec((tb, obs), lambda i: (i, 0))     # streamed batch tiles
    out_spec = pl.BlockSpec((tb, zd), lambda i: (i, 0))

    vmem_limit = int(min(64 * 1024 * 1024,
                         max(32 * 1024 * 1024,
                             (weight_bytes + _stream_scratch_bytes(tb)) * 5 // 4)))
    compiler_params = pltpu.CompilerParams(
        dimension_semantics=("parallel",),                    # 2 TCs on v7x
        vmem_limit_bytes=vmem_limit,
    )

    flops = 2 * b_pad * (obs * hid_p + hid_p * hid_p + hid_p * zd)
    bytes_accessed = (int(goal_in.size) * goal_itemsize
                      + sum(int(a.size) * a.dtype.itemsize for a in weight_args)
                      + b_pad * zd * out_itemsize)
    cost = pl.CostEstimate(flops=int(flops), transcendentals=int(2 * b_pad),
                           bytes_accessed=int(bytes_accessed))

    def _run(single_buffer_weights):
        def wspec(shape):
            imap = lambda i: (0, 0)                           # VMEM-resident across grid steps
            if single_buffer_weights:
                # Constant-index_map params never get re-DMA'd; single-buffer
                # them to halve their resident VMEM footprint.
                return pl.BlockSpec(shape, imap, pipeline_mode=pl.Buffered(1))
            return pl.BlockSpec(shape, imap)

        return pl.pallas_call(
            kernel,
            out_shape=jax.ShapeDtypeStruct((b_pad, zd), out_dtype),
            grid=grid,
            in_specs=[goal_spec] + [wspec(s) for s in weight_shapes],
            out_specs=out_spec,
            compiler_params=compiler_params,
            cost_estimate=cost,
        )(goal_in, *weight_args)

    try:
        out = _run(True)
    except Exception:
        # Graceful fallback if this jax build rejects pipeline_mode/Buffered(1)
        # on top-level pallas_call BlockSpecs (default double-buffering instead).
        out = _run(False)

    return out if b_pad == B else out[:B]


# --------------------------- Reference (plain JAX) -------------------------- #
def hilp_features_forward_ref(goal, params, running_mean, *, z_dim, ln_eps=1e-5):
    w0, b0, g, beta, w1, b1, w2, b2 = params
    h = goal @ w0 + b0
    mu = h.mean(-1, keepdims=True)
    var = ((h - mu) ** 2).mean(-1, keepdims=True)
    h = (h - mu) / jnp.sqrt(var + ln_eps) * g + beta
    h = jnp.maximum(h, 0.0)
    h = jnp.maximum(h @ w1 + b1, 0.0)
    z = h @ w2 + b2
    norm = jnp.maximum(jnp.linalg.norm(z, axis=-1, keepdims=True), 1e-12)
    z = math.sqrt(z_dim) * z / norm
    return z - running_mean


# --------------------------------- Main ------------------------------------ #
if __name__ == "__main__":
    B, OBS, HID, ZDIM = 8, 16, 32, 8

    key = jax.random.PRNGKey(0)
    ks = jax.random.split(key, 8)

    def linear_init(kw, kb, fan_in, fan_out):
        bound = 1.0 / math.sqrt(fan_in)
        w = jax.random.uniform(kw, (fan_in, fan_out), jnp.float32, -bound, bound)
        b = jax.random.uniform(kb, (fan_out,), jnp.float32, -bound, bound)
        return w, b

    w0, b0 = linear_init(ks[0], ks[1], OBS, HID)
    gamma = jnp.ones((HID,), jnp.float32)
    beta = jnp.zeros((HID,), jnp.float32)
    w1, b1 = linear_init(ks[2], ks[3], HID, HID)
    w2, b2 = linear_init(ks[4], ks[5], HID, ZDIM)
    raw_params = (w0, b0, gamma, beta, w1, b1, w2, b2)

    running_mean = jnp.zeros((ZDIM,), jnp.float32)  # buffer init: zeros

    # --- f32 compute path: validates the kernel math bit-for-bit-ish. ---
    prep_f32 = prepare_hilp_params(raw_params, running_mean, z_dim=ZDIM,
                                   compute_dtype=jnp.float32)
    goal = jax.random.normal(ks[6], (B, OBS), jnp.float32)
    phi = jax.block_until_ready(hilp_features_forward(goal, prep_f32))
    phi_ref = hilp_features_forward_ref(goal, raw_params, running_mean, z_dim=ZDIM)
    assert phi.shape == (B, ZDIM)
    assert jnp.allclose(phi, phi_ref, atol=1e-5, rtol=1e-5), (
        float(jnp.max(jnp.abs(phi - phi_ref))))

    # --- bf16 MXU path (production default), multi-tile batch grid. ---
    prep_bf16 = prepare_hilp_params(raw_params, running_mean, z_dim=ZDIM)  # bf16 weights
    B2 = 300
    goal2 = jax.random.normal(ks[7], (B2, OBS), jnp.float32)
    phi2 = jax.block_until_ready(
        hilp_features_forward(goal2, prep_bf16, tile_b=128))
    phi2_ref = hilp_features_forward_ref(goal2, raw_params, running_mean, z_dim=ZDIM)
    assert phi2.shape == (B2, ZDIM)
    # bf16 matmuls diverge from the f32 reference; use a loose tolerance.
    assert jnp.allclose(phi2, phi2_ref, atol=1e-1, rtol=1e-1), (
        float(jnp.max(jnp.abs(phi2 - phi2_ref))))

    print("KERNEL_OK")
</pallas_src>

<mosaic_0001>
module attributes {stable_mosaic.version = 11 : i64} {
  func.func @_hilp_forward_kernel(%arg0: i32, %arg1: memref<8x16xf32, #tpu.memory_space<vmem>>, %arg2: memref<16x128xf32, #tpu.memory_space<vmem>>, %arg3: memref<1x128xf32, #tpu.memory_space<vmem>>, %arg4: memref<1x128xf32, #tpu.memory_space<vmem>>, %arg5: memref<1x128xf32, #tpu.memory_space<vmem>>, %arg6: memref<128x128xf32, #tpu.memory_space<vmem>>, %arg7: memref<1x128xf32, #tpu.memory_space<vmem>>, %arg8: memref<128x8xf32, #tpu.memory_space<vmem>>, %arg9: memref<1x8xf32, #tpu.memory_space<vmem>>, %arg10: memref<1x8xf32, #tpu.memory_space<vmem>>, %arg11: memref<8x8xf32, #tpu.memory_space<vmem>>) attributes {dimension_semantics = [#tpu.dimension_semantics<parallel>], iteration_bounds = array<i64: 1>, scalar_prefetch = 0 : i64, scratch_operands = 0 : i64, tpu.core_type = #tpu.core_type<tc>, window_params = [{transform_indices = @transform_0, window_bounds = array<i64: 8, 16>}, {pipeline_mode = #tpu.pipeline_mode<synchronous>, transform_indices = @transform_1, window_bounds = array<i64: 16, 128>}, {pipeline_mode = #tpu.pipeline_mode<synchronous>, transform_indices = @transform_2, window_bounds = array<i64: 1, 128>}, {pipeline_mode = #tpu.pipeline_mode<synchronous>, transform_indices = @transform_3, window_bounds = array<i64: 1, 128>}, {pipeline_mode = #tpu.pipeline_mode<synchronous>, transform_indices = @transform_4, window_bounds = array<i64: 1, 128>}, {pipeline_mode = #tpu.pipeline_mode<synchronous>, transform_indices = @transform_5, window_bounds = array<i64: 128, 128>}, {pipeline_mode = #tpu.pipeline_mode<synchronous>, transform_indices = @transform_6, window_bounds = array<i64: 1, 128>}, {pipeline_mode = #tpu.pipeline_mode<synchronous>, transform_indices = @transform_7, window_bounds = array<i64: 128, 8>}, {pipeline_mode = #tpu.pipeline_mode<synchronous>, transform_indices = @transform_8, window_bounds = array<i64: 1, 8>}, {pipeline_mode = #tpu.pipeline_mode<synchronous>, transform_indices = @transform_9, window_bounds = array<i64: 1, 8>}, {transform_indices = @transform_10, window_bounds = array<i64: 8, 8>}]} {
    %c0 = arith.constant 0 : index
    %c0_0 = arith.constant 0 : index
    %0 = vector.load %arg1[%c0, %c0_0] : memref<8x16xf32, #tpu.memory_space<vmem>>, vector<8x16xf32>
    %c0_1 = arith.constant 0 : index
    %c0_2 = arith.constant 0 : index
    %1 = vector.load %arg2[%c0_1, %c0_2] : memref<16x128xf32, #tpu.memory_space<vmem>>, vector<16x128xf32>
    %cst = arith.constant dense<0.000000e+00> : vector<8x128xf32>
    %2 = tpu.matmul %0, %1, %cst {dimension_numbers = #tpu.dot_dimension_numbers<[1], [0], [0], [1], [0, 0, 1, 1], [], []>} : vector<8x16xf32>, vector<16x128xf32>, vector<8x128xf32> -> vector<8x128xf32>
    %c0_3 = arith.constant 0 : index
    %c0_4 = arith.constant 0 : index
    %3 = vector.load %arg3[%c0_3, %c0_4] : memref<1x128xf32, #tpu.memory_space<vmem>>, vector<1x128xf32>
    %4 = vector.broadcast %3 : vector<1x128xf32> to vector<8x128xf32>
    %5 = arith.addf %2, %4 : vector<8x128xf32>
    %cst_5 = arith.constant dense<0.000000e+00> : vector<8xf32>
    %6 = vector.multi_reduction <add>, %5, %cst_5 [1] : vector<8x128xf32> to vector<8xf32>
    %7 = vector.shape_cast %6 : vector<8xf32> to vector<8x1xf32>
    %cst_6 = arith.constant 3.125000e-02 : f32
    %8 = vector.broadcast %cst_6 : f32 to vector<8x1xf32>
    %9 = arith.mulf %7, %8 : vector<8x1xf32>
    %10 = vector.broadcast %9 : vector<8x1xf32> to vector<8x128xf32>
    %11 = arith.subf %5, %10 : vector<8x128xf32>
    %12 = arith.mulf %11, %11 : vector<8x128xf32>
    %cst_7 = arith.constant dense<0.000000e+00> : vector<8xf32>
    %13 = vector.multi_reduction <add>, %12, %cst_7 [1] : vector<8x128xf32> to vector<8xf32>
    %14 = vector.shape_cast %13 : vector<8xf32> to vector<8x1xf32>
    %15 = arith.mulf %9, %9 : vector<8x1xf32>
    %cst_8 = arith.constant 9.600000e+01 : f32
    %16 = vector.broadcast %cst_8 : f32 to vector<8x1xf32>
    %17 = arith.mulf %16, %15 : vector<8x1xf32>
    %18 = arith.subf %14, %17 : vector<8x1xf32>
    %cst_9 = arith.constant 3.125000e-02 : f32
    %19 = vector.broadcast %cst_9 : f32 to vector<8x1xf32>
    %20 = arith.mulf %18, %19 : vector<8x1xf32>
    %cst_10 = arith.constant 9.99999974E-6 : f32
    %21 = vector.broadcast %cst_10 : f32 to vector<8x1xf32>
    %22 = arith.addf %20, %21 : vector<8x1xf32>
    %23 = math.rsqrt %22 : vector<8x1xf32>
    %24 = vector.broadcast %23 : vector<8x1xf32> to vector<8x128xf32>
    %25 = arith.mulf %11, %24 : vector<8x128xf32>
    %c0_11 = arith.constant 0 : index
    %c0_12 = arith.constant 0 : index
    %26 = vector.load %arg4[%c0_11, %c0_12] : memref<1x128xf32, #tpu.memory_space<vmem>>, vector<1x128xf32>
    %27 = vector.broadcast %26 : vector<1x128xf32> to vector<8x128xf32>
    %28 = arith.mulf %25, %27 : vector<8x128xf32>
    %c0_13 = arith.constant 0 : index
    %c0_14 = arith.constant 0 : index
    %29 = vector.load %arg5[%c0_13, %c0_14] : memref<1x128xf32, #tpu.memory_space<vmem>>, vector<1x128xf32>
    %30 = vector.broadcast %29 : vector<1x128xf32> to vector<8x128xf32>
    %31 = arith.addf %28, %30 : vector<8x128xf32>
    %cst_15 = arith.constant 0.000000e+00 : f32
    %32 = vector.broadcast %cst_15 : f32 to vector<8x128xf32>
    %33 = arith.maximumf %31, %32 : vector<8x128xf32>
    %c0_16 = arith.constant 0 : index
    %c0_17 = arith.constant 0 : index
    %34 = vector.load %arg6[%c0_16, %c0_17] : memref<128x128xf32, #tpu.memory_space<vmem>>, vector<128x128xf32>
    %cst_18 = arith.constant dense<0.000000e+00> : vector<8x128xf32>
    %35 = tpu.matmul %33, %34, %cst_18 {dimension_numbers = #tpu.dot_dimension_numbers<[1], [0], [0], [1], [0, 0, 1, 1], [], []>} : vector<8x128xf32>, vector<128x128xf32>, vector<8x128xf32> -> vector<8x128xf32>
    %c0_19 = arith.constant 0 : index
    %c0_20 = arith.constant 0 : index
    %36 = vector.load %arg7[%c0_19, %c0_20] : memref<1x128xf32, #tpu.memory_space<vmem>>, vector<1x128xf32>
    %37 = vector.broadcast %36 : vector<1x128xf32> to vector<8x128xf32>
    %38 = arith.addf %35, %37 : vector<8x128xf32>
    %cst_21 = arith.constant 0.000000e+00 : f32
    %39 = vector.broadcast %cst_21 : f32 to vector<8x128xf32>
    %40 = arith.maximumf %38, %39 : vector<8x128xf32>
    %c0_22 = arith.constant 0 : index
    %c0_23 = arith.constant 0 : index
    %41 = vector.load %arg8[%c0_22, %c0_23] : memref<128x8xf32, #tpu.memory_space<vmem>>, vector<128x8xf32>
    %cst_24 = arith.constant dense<0.000000e+00> : vector<8x8xf32>
    %42 = tpu.matmul %40, %41, %cst_24 {dimension_numbers = #tpu.dot_dimension_numbers<[1], [0], [0], [1], [0, 0, 1, 1], [], []>} : vector<8x128xf32>, vector<128x8xf32>, vector<8x8xf32> -> vector<8x8xf32>
    %c0_25 = arith.constant 0 : index
    %c0_26 = arith.constant 0 : index
    %43 = vector.load %arg9[%c0_25, %c0_26] : memref<1x8xf32, #tpu.memory_space<vmem>>, vector<1x8xf32>
    %44 = vector.broadcast %43 : vector<1x8xf32> to vector<8x8xf32>
    %45 = arith.addf %42, %44 : vector<8x8xf32>
    %46 = arith.mulf %45, %45 : vector<8x8xf32>
    %cst_27 = arith.constant dense<0.000000e+00> : vector<8xf32>
    %47 = vector.multi_reduction <add>, %46, %cst_27 [1] : vector<8x8xf32> to vector<8xf32>
    %48 = vector.shape_cast %47 : vector<8xf32> to vector<8x1xf32>
    %cst_28 = arith.constant 1.000000e-24 : f32
    %49 = vector.broadcast %cst_28 : f32 to vector<8x1xf32>
    %50 = arith.maximumf %48, %49 : vector<8x1xf32>
    %51 = math.rsqrt %50 : vector<8x1xf32>
    %cst_29 = arith.constant 2.82842708 : f32
    %52 = vector.broadcast %cst_29 : f32 to vector<8x1xf32>
    %53 = arith.mulf %52, %51 : vector<8x1xf32>
    %54 = vector.broadcast %53 : vector<8x1xf32> to vector<8x8xf32>
    %55 = arith.mulf %45, %54 : vector<8x8xf32>
    %c0_30 = arith.constant 0 : index
    %c0_31 = arith.constant 0 : index
    %56 = vector.load %arg10[%c0_30, %c0_31] : memref<1x8xf32, #tpu.memory_space<vmem>>, vector<1x8xf32>
    %57 = vector.broadcast %56 : vector<1x8xf32> to vector<8x8xf32>
    %58 = arith.subf %55, %57 : vector<8x8xf32>
    %c0_32 = arith.constant 0 : index
    %c0_33 = arith.constant 0 : index
    %59 = vector.load %arg11[%c0_32, %c0_33] : memref<8x8xf32, #tpu.memory_space<vmem>>, vector<8x8xf32>
    tpu.vector_store %arg11[%c0_32, %c0_33], %58 {strides = array<i32>} : memref<8x8xf32, #tpu.memory_space<vmem>>, vector<8x8xf32>,
    return
  }
  func.func @transform_0(%arg0: i32) -> (i32, i32) {
    %c0_i32 = arith.constant 0 : i32
    %c0_i32_0 = arith.constant 0 : i32
    return %arg0, %c0_i32 : i32, i32
  }
  func.func @transform_1(%arg0: i32) -> (i32, i32) {
    %c0_i32 = arith.constant 0 : i32
    %c0_i32_0 = arith.constant 0 : i32
    %c0_i32_1 = arith.constant 0 : i32
    return %c0_i32, %c0_i32_0 : i32, i32
  }
  func.func @transform_2(%arg0: i32) -> (i32, i32) {
    %c0_i32 = arith.constant 0 : i32
    %c0_i32_0 = arith.constant 0 : i32
    %c0_i32_1 = arith.constant 0 : i32
    return %c0_i32, %c0_i32_0 : i32, i32
  }
  func.func @transform_3(%arg0: i32) -> (i32, i32) {
    %c0_i32 = arith.constant 0 : i32
    %c0_i32_0 = arith.constant 0 : i32
    %c0_i32_1 = arith.constant 0 : i32
    return %c0_i32, %c0_i32_0 : i32, i32
  }
  func.func @transform_4(%arg0: i32) -> (i32, i32) {
    %c0_i32 = arith.constant 0 : i32
    %c0_i32_0 = arith.constant 0 : i32
    %c0_i32_1 = arith.constant 0 : i32
    return %c0_i32, %c0_i32_0 : i32, i32
  }
  func.func @transform_5(%arg0: i32) -> (i32, i32) {
    %c0_i32 = arith.constant 0 : i32
    %c0_i32_0 = arith.constant 0 : i32
    %c0_i32_1 = arith.constant 0 : i32
    return %c0_i32, %c0_i32_0 : i32, i32
  }
  func.func @transform_6(%arg0: i32) -> (i32, i32) {
    %c0_i32 = arith.constant 0 : i32
    %c0_i32_0 = arith.constant 0 : i32
    %c0_i32_1 = arith.constant 0 : i32
    return %c0_i32, %c0_i32_0 : i32, i32
  }
  func.func @transform_7(%arg0: i32) -> (i32, i32) {
    %c0_i32 = arith.constant 0 : i32
    %c0_i32_0 = arith.constant 0 : i32
    %c0_i32_1 = arith.constant 0 : i32
    return %c0_i32, %c0_i32_0 : i32, i32
  }
  func.func @transform_8(%arg0: i32) -> (i32, i32) {
    %c0_i32 = arith.constant 0 : i32
    %c0_i32_0 = arith.constant 0 : i32
    %c0_i32_1 = arith.constant 0 : i32
    return %c0_i32, %c0_i32_0 : i32, i32
  }
  func.func @transform_9(%arg0: i32) -> (i32, i32) {
    %c0_i32 = arith.constant 0 : i32
    %c0_i32_0 = arith.constant 0 : i32
    %c0_i32_1 = arith.constant 0 : i32
    return %c0_i32, %c0_i32_0 : i32, i32
  }
  func.func @transform_10(%arg0: i32) -> (i32, i32) {
    %c0_i32 = arith.constant 0 : i32
    %c0_i32_0 = arith.constant 0 : i32
    return %arg0, %c0_i32 : i32, i32
  }
}

module attributes {stable_mosaic.version = 11 : i64} {
  func.func @_hilp_forward_kernel(%arg0: i32, %arg1: memref<8x16xf32, #tpu.memory_space<vmem>>, %arg2: memref<16x128xf32, #tpu.memory_space<vmem>>, %arg3: memref<1x128xf32, #tpu.memory_space<vmem>>, %arg4: memref<1x128xf32, #tpu.memory_space<vmem>>, %arg5: memref<1x128xf32, #tpu.memory_space<vmem>>, %arg6: memref<128x128xf32, #tpu.memory_space<vmem>>, %arg7: memref<1x128xf32, #tpu.memory_space<vmem>>, %arg8: memref<128x8xf32, #tpu.memory_space<vmem>>, %arg9: memref<1x8xf32, #tpu.memory_space<vmem>>, %arg10: memref<1x8xf32, #tpu.memory_space<vmem>>, %arg11: memref<8x8xf32, #tpu.memory_space<vmem>>) attributes {dimension_semantics = [#tpu.dimension_semantics<parallel>], iteration_bounds = array<i64: 1>, scalar_prefetch = 0 : i64, scratch_operands = 0 : i64, tpu.core_type = #tpu.core_type<tc>, window_params = [{transform_indices = @transform_0, window_bounds = array<i64: 8, 16>}, {pipeline_mode = #tpu.pipeline_mode<synchronous>, transform_indices = @transform_1, window_bounds = array<i64: 16, 128>}, {pipeline_mode = #tpu.pipeline_mode<synchronous>, transform_indices = @transform_2, window_bounds = array<i64: 1, 128>}, {pipeline_mode = #tpu.pipeline_mode<synchronous>, transform_indices = @transform_3, window_bounds = array<i64: 1, 128>}, {pipeline_mode = #tpu.pipeline_mode<synchronous>, transform_indices = @transform_4, window_bounds = array<i64: 1, 128>}, {pipeline_mode = #tpu.pipeline_mode<synchronous>, transform_indices = @transform_5, window_bounds = array<i64: 128, 128>}, {pipeline_mode = #tpu.pipeline_mode<synchronous>, transform_indices = @transform_6, window_bounds = array<i64: 1, 128>}, {pipeline_mode = #tpu.pipeline_mode<synchronous>, transform_indices = @transform_7, window_bounds = array<i64: 128, 8>}, {pipeline_mode = #tpu.pipeline_mode<synchronous>, transform_indices = @transform_8, window_bounds = array<i64: 1, 8>}, {pipeline_mode = #tpu.pipeline_mode<synchronous>, transform_indices = @transform_9, window_bounds = array<i64: 1, 8>}, {transform_indices = @transform_10, window_bounds = array<i64: 8, 8>}]} {
    %c0 = arith.constant 0 : index
    %c0_0 = arith.constant 0 : index
    %0 = vector.load %arg1[%c0, %c0_0] : memref<8x16xf32, #tpu.memory_space<vmem>>, vector<8x16xf32>
    %c0_1 = arith.constant 0 : index
    %c0_2 = arith.constant 0 : index
    %1 = vector.load %arg2[%c0_1, %c0_2] : memref<16x128xf32, #tpu.memory_space<vmem>>, vector<16x128xf32>
    %cst = arith.constant dense<0.000000e+00> : vector<8x128xf32>
    %2 = tpu.matmul %0, %1, %cst {dimension_numbers = #tpu.dot_dimension_numbers<[1], [0], [0], [1], [0, 0, 1, 1], [], []>} : vector<8x16xf32>, vector<16x128xf32>, vector<8x128xf32> -> vector<8x128xf32>
    %c0_3 = arith.constant 0 : index
    %c0_4 = arith.constant 0 : index
    %3 = vector.load %arg3[%c0_3, %c0_4] : memref<1x128xf32, #tpu.memory_space<vmem>>, vector<1x128xf32>
    %4 = vector.broadcast %3 : vector<1x128xf32> to vector<8x128xf32>
    %5 = arith.addf %2, %4 : vector<8x128xf32>
    %cst_5 = arith.constant dense<0.000000e+00> : vector<8xf32>
    %6 = vector.multi_reduction <add>, %5, %cst_5 [1] : vector<8x128xf32> to vector<8xf32>
    %7 = vector.shape_cast %6 : vector<8xf32> to vector<8x1xf32>
    %cst_6 = arith.constant 3.125000e-02 : f32
    %8 = vector.broadcast %cst_6 : f32 to vector<8x1xf32>
    %9 = arith.mulf %7, %8 : vector<8x1xf32>
    %10 = vector.broadcast %9 : vector<8x1xf32> to vector<8x128xf32>
    %11 = arith.subf %5, %10 : vector<8x128xf32>
    %12 = arith.mulf %11, %11 : vector<8x128xf32>
    %cst_7 = arith.constant dense<0.000000e+00> : vector<8xf32>
    %13 = vector.multi_reduction <add>, %12, %cst_7 [1] : vector<8x128xf32> to vector<8xf32>
    %14 = vector.shape_cast %13 : vector<8xf32> to vector<8x1xf32>
    %15 = arith.mulf %9, %9 : vector<8x1xf32>
    %cst_8 = arith.constant 9.600000e+01 : f32
    %16 = vector.broadcast %cst_8 : f32 to vector<8x1xf32>
    %17 = arith.mulf %16, %15 : vector<8x1xf32>
    %18 = arith.subf %14, %17 : vector<8x1xf32>
    %cst_9 = arith.constant 3.125000e-02 : f32
    %19 = vector.broadcast %cst_9 : f32 to vector<8x1xf32>
    %20 = arith.mulf %18, %19 : vector<8x1xf32>
    %cst_10 = arith.constant 9.99999974E-6 : f32
    %21 = vector.broadcast %cst_10 : f32 to vector<8x1xf32>
    %22 = arith.addf %20, %21 : vector<8x1xf32>
    %23 = math.rsqrt %22 : vector<8x1xf32>
    %24 = vector.broadcast %23 : vector<8x1xf32> to vector<8x128xf32>
    %25 = arith.mulf %11, %24 : vector<8x128xf32>
    %c0_11 = arith.constant 0 : index
    %c0_12 = arith.constant 0 : index
    %26 = vector.load %arg4[%c0_11, %c0_12] : memref<1x128xf32, #tpu.memory_space<vmem>>, vector<1x128xf32>
    %27 = vector.broadcast %26 : vector<1x128xf32> to vector<8x128xf32>
    %28 = arith.mulf %25, %27 : vector<8x128xf32>
    %c0_13 = arith.constant 0 : index
    %c0_14 = arith.constant 0 : index
    %29 = vector.load %arg5[%c0_13, %c0_14] : memref<1x128xf32, #tpu.memory_space<vmem>>, vector<1x128xf32>
    %30 = vector.broadcast %29 : vector<1x128xf32> to vector<8x128xf32>
    %31 = arith.addf %28, %30 : vector<8x128xf32>
    %cst_15 = arith.constant 0.000000e+00 : f32
    %32 = vector.broadcast %cst_15 : f32 to vector<8x128xf32>
    %33 = arith.maximumf %31, %32 : vector<8x128xf32>
    %c0_16 = arith.constant 0 : index
    %c0_17 = arith.constant 0 : index
    %34 = vector.load %arg6[%c0_16, %c0_17] : memref<128x128xf32, #tpu.memory_space<vmem>>, vector<128x128xf32>
    %cst_18 = arith.constant dense<0.000000e+00> : vector<8x128xf32>
    %35 = tpu.matmul %33, %34, %cst_18 {dimension_numbers = #tpu.dot_dimension_numbers<[1], [0], [0], [1], [0, 0, 1, 1], [], []>} : vector<8x128xf32>, vector<128x128xf32>, vector<8x128xf32> -> vector<8x128xf32>
    %c0_19 = arith.constant 0 : index
    %c0_20 = arith.constant 0 : index
    %36 = vector.load %arg7[%c0_19, %c0_20] : memref<1x128xf32, #tpu.memory_space<vmem>>, vector<1x128xf32>
    %37 = vector.broadcast %36 : vector<1x128xf32> to vector<8x128xf32>
    %38 = arith.addf %35, %37 : vector<8x128xf32>
    %cst_21 = arith.constant 0.000000e+00 : f32
    %39 = vector.broadcast %cst_21 : f32 to vector<8x128xf32>
    %40 = arith.maximumf %38, %39 : vector<8x128xf32>
    %c0_22 = arith.constant 0 : index
    %c0_23 = arith.constant 0 : index
    %41 = vector.load %arg8[%c0_22, %c0_23] : memref<128x8xf32, #tpu.memory_space<vmem>>, vector<128x8xf32>
    %cst_24 = arith.constant dense<0.000000e+00> : vector<8x8xf32>
    %42 = tpu.matmul %40, %41, %cst_24 {dimension_numbers = #tpu.dot_dimension_numbers<[1], [0], [0], [1], [0, 0, 1, 1], [], []>} : vector<8x128xf32>, vector<128x8xf32>, vector<8x8xf32> -> vector<8x8xf32>
    %c0_25 = arith.constant 0 : index
    %c0_26 = arith.constant 0 : index
    %43 = vector.load %arg9[%c0_25, %c0_26] : memref<1x8xf32, #tpu.memory_space<vmem>>, vector<1x8xf32>
    %44 = vector.broadcast %43 : vector<1x8xf32> to vector<8x8xf32>
    %45 = arith.addf %42, %44 : vector<8x8xf32>
    %46 = arith.mulf %45, %45 : vector<8x8xf32>
    %cst_27 = arith.constant dense<0.000000e+00> : vector<8xf32>
    %47 = vector.multi_reduction <add>, %46, %cst_27 [1] : vector<8x8xf32> to vector<8xf32>
    %48 = vector.shape_cast %47 : vector<8xf32> to vector<8x1xf32>
    %cst_28 = arith.constant 1.000000e-24 : f32
    %49 = vector.broadcast %cst_28 : f32 to vector<8x1xf32>
    %50 = arith.maximumf %48, %49 : vector<8x1xf32>
    %51 = math.rsqrt %50 : vector<8x1xf32>
    %cst_29 = arith.constant 2.82842708 : f32
    %52 = vector.broadcast %cst_29 : f32 to vector<8x1xf32>
    %53 = arith.mulf %52, %51 : vector<8x1xf32>
    %54 = vector.broadcast %53 : vector<8x1xf32> to vector<8x8xf32>
    %55 = arith.mulf %45, %54 : vector<8x8xf32>
    %c0_30 = arith.constant 0 : index
    %c0_31 = arith.constant 0 : index
    %56 = vector.load %arg10[%c0_30, %c0_31] : memref<1x8xf32, #tpu.memory_space<vmem>>, vector<1x8xf32>
    %57 = vector.broadcast %56 : vector<1x8xf32> to vector<8x8xf32>
    %58 = arith.subf %55, %57 : vector<8x8xf32>
    %c0_32 = arith.constant 0 : index
    %c0_33 = arith.constant 0 : index
    %59 = vector.load %arg11[%c0_32, %c0_33] : memref<8x8xf32, #tpu.memory_space<vmem>>, vector<8x8xf32>
    tpu.vector_store %arg11[%c0_32, %c0_33], %58 {strides = array<i32>} : memref<8x8xf32, #tpu.memory_space<vmem>>, vector<8x8xf32>,
    return
  }
  func.func @transform_0(%arg0: i32) -> (i32, i32) {
    %c0_i32 = arith.constant 0 : i32
    %c0_i32_0 = arith.constant 0 : i32
    return %arg0, %c0_i32 : i32, i32
  }
  func.func @transform_1(%arg0: i32) -> (i32, i32) {
    %c0_i32 = arith.constant 0 : i32
    %c0_i32_0 = arith.constant 0 : i32
    %c0_i32_1 = arith.constant 0 : i32
    return %c0_i32, %c0_i32_0 : i32, i32
  }
  func.func @transform_2(%arg0: i32) -> (i32, i32) {
    %c0_i32 = arith.constant 0 : i32
    %c0_i32_0 = arith.constant 0 : i32
    %c0_i32_1 = arith.constant 0 : i32
    return %c0_i32, %c0_i32_0 : i32, i32
  }
  func.func @transform_3(%arg0: i32) -> (i32, i32) {
    %c0_i32 = arith.constant 0 : i32
    %c0_i32_0 = arith.constant 0 : i32
    %c0_i32_1 = arith.constant 0 : i32
    return %c0_i32, %c0_i32_0 : i32, i32
  }
  func.func @transform_4(%arg0: i32) -> (i32, i32) {
    %c0_i32 = arith.constant 0 : i32
    %c0_i32_0 = arith.constant 0 : i32
    %c0_i32_1 = arith.constant 0 : i32
    return %c0_i32, %c0_i32_0 : i32, i32
  }
  func.func @transform_5(%arg0: i32) -> (i32, i32) {
    %c0_i32 = arith.constant 0 : i32
    %c0_i32_0 = arith.constant 0 : i32
    %c0_i32_1 = arith.constant 0 : i32
    return %c0_i32, %c0_i32_0 : i32, i32
  }
  func.func @transform_6(%arg0: i32) -> (i32, i32) {
    %c0_i32 = arith.constant 0 : i32
    %c0_i32_0 = arith.constant 0 : i32
    %c0_i32_1 = arith.constant 0 : i32
    return %c0_i32, %c0_i32_0 : i32, i32
  }
  func.func @transform_7(%arg0: i32) -> (i32, i32) {
    %c0_i32 = arith.constant 0 : i32
    %c0_i32_0 = arith.constant 0 : i32
    %c0_i32_1 = arith.constant 0 : i32
    return %c0_i32, %c0_i32_0 : i32, i32
  }
  func.func @transform_8(%arg0: i32) -> (i32, i32) {
    %c0_i32 = arith.constant 0 : i32
    %c0_i32_0 = arith.constant 0 : i32
    %c0_i32_1 = arith.constant 0 : i32
    return %c0_i32, %c0_i32_0 : i32, i32
  }
  func.func @transform_9(%arg0: i32) -> (i32, i32) {
    %c0_i32 = arith.constant 0 : i32
    %c0_i32_0 = arith.constant 0 : i32
    %c0_i32_1 = arith.constant 0 : i32
    return %c0_i32, %c0_i32_0 : i32, i32
  }
  func.func @transform_10(%arg0: i32) -> (i32, i32) {
    %c0_i32 = arith.constant 0 : i32
    %c0_i32_0 = arith.constant 0 : i32
    return %arg0, %c0_i32 : i32, i32
  }
}

</mosaic_0001>

<llo_original>
// kernel: tpu_custom_call.1
$region0: #{tpu_custom_call.1}
  #allocation0 [shape = 'u32[]', space=smem, size = 0x4, offset = 0x4, fixed_abs, tag = 'smem constant byte address 0x4 - core index']
  #allocation1 [shape = 'u32[144,128]{1,0:T(1,128)}', space=vmem, size = 0x12000, scoped, tag = 'internal scratch']
  %s0 = inlined_call_operand.hbm [shape: f32[8,16], index: 0, kind: input, shape index: {}]
  %s1 = inlined_call_operand.vmem [shape: f32[16,128], index: 1, kind: input, shape index: {}]
  %s2 = inlined_call_operand.vmem [shape: f32[1,128], index: 2, kind: input, shape index: {}]
  %s3 = inlined_call_operand.vmem [shape: f32[1,128], index: 3, kind: input, shape index: {}]
  %s4 = inlined_call_operand.vmem [shape: f32[1,128], index: 4, kind: input, shape index: {}]
  %s5 = inlined_call_operand.vmem [shape: f32[128,128], index: 5, kind: input, shape index: {}]
  %s6 = inlined_call_operand.vmem [shape: f32[1,128], index: 6, kind: input, shape index: {}]
  %s7 = inlined_call_operand.vmem [shape: f32[128,8], index: 7, kind: input, shape index: {}]
  %s8 = inlined_call_operand.vmem [shape: f32[1,8], index: 8, kind: input, shape index: {}]
  %s9 = inlined_call_operand.vmem [shape: f32[1,8], index: 9, kind: input, shape index: {}]
  %s10 = inlined_call_operand.hbm [shape: f32[8,8], index: 10, kind: output, shape index: {}]
  %s11 = sld [smem:[#allocation0]]
  $region54: #{tpu_custom_call.1} parent=0
    _
  %s13 = ssub.s32 1, %s11
  %s14 = scalar_select 0, %s13, %s11
  $region1: #{tpu_custom_call.1} parent=0
    #allocation2 [shape = 'u8[4096]{0}', space=vmem, size = 0x1000, scoped, tag = 'input window, operand 0, single buffered']
    #allocation3 [shape = 's32[1]{0}', space=sflag, size = 0x4, scoped, tag = 'scoped memory for tpu_custom_call.1']
    #allocation4 [shape = 's32[1]{0}', space=sflag, size = 0x4, scoped, tag = 'scoped memory for tpu_custom_call.1']
    #allocation5 [shape = 'u8[4096]{0}', space=vmem, size = 0x1000, scoped, tag = 'output window, operand 0, single buffered']
    %15 = vsyncpa [#allocation3], 0
    %16 = vsyncpa [#allocation4], 0
    // Predicated region
    $region2: #{tpu_custom_call.1} parent=1 // pred_check
      _
    $region3: #{tpu_custom_call.1} parent=1 // pred_check_branch
      %18 = sbr.rel (0) target = $region5
    $region4: #{tpu_custom_call.1} parent=1 // pred_region
      %s20 = ssub.s32 128, 128
      %21 = vsyncadd [#allocation3], %s20
      %s23 = sshll.u32 [#allocation2], 4
      %s24 = int_to_ptr.vmem [resolvable:$true] %s23
      %26 = dma.hbm_to_vmem [thread:$0]  %s0, 128, %s24, [#allocation3]
    $region5: #{tpu_custom_call.1} parent=1 // pred_fallthru
      _
    // Predicated region
    $region6: #{tpu_custom_call.1} parent=1 // pred_check
      _
    $region7: #{tpu_custom_call.1} parent=1 // pred_check_branch
      %28 = sbr.rel (0) target = $region9
    $region8: #{tpu_custom_call.1} parent=1 // pred_region
      _
    $region9: #{tpu_custom_call.1} parent=1 // pred_fallthru
      _
    // Predicated region
    $region10: #{tpu_custom_call.1} parent=1 // pred_check
      _
    $region11: #{tpu_custom_call.1} parent=1 // pred_check_branch
      %30 = sbr.rel (0) target = $region13
    $region12: #{tpu_custom_call.1} parent=1 // pred_region
      _
    $region13: #{tpu_custom_call.1} parent=1 // pred_fallthru
      _
    // Predicated region
    $region14: #{tpu_custom_call.1} parent=1 // pred_check
      _
    $region15: #{tpu_custom_call.1} parent=1 // pred_check_branch
      %32 = sbr.rel (0) target = $region17
    $region16: #{tpu_custom_call.1} parent=1 // pred_region
      _
    $region17: #{tpu_custom_call.1} parent=1 // pred_fallthru
      _
    // Predicated region
    $region18: #{tpu_custom_call.1} parent=1 // pred_check
      _
    $region19: #{tpu_custom_call.1} parent=1 // pred_check_branch
      %34 = sbr.rel (0) target = $region21
    $region20: #{tpu_custom_call.1} parent=1 // pred_region
      _
    $region21: #{tpu_custom_call.1} parent=1 // pred_fallthru
      _
    // Predicated region
    $region22: #{tpu_custom_call.1} parent=1 // pred_check
      _
    $region23: #{tpu_custom_call.1} parent=1 // pred_check_branch
      %36 = sbr.rel (0) target = $region25
    $region24: #{tpu_custom_call.1} parent=1 // pred_region
      _
    $region25: #{tpu_custom_call.1} parent=1 // pred_fallthru
      _
    // Predicated region
    $region26: #{tpu_custom_call.1} parent=1 // pred_check
      _
    $region27: #{tpu_custom_call.1} parent=1 // pred_check_branch
      %38 = sbr.rel (0) target = $region29
    $region28: #{tpu_custom_call.1} parent=1 // pred_region
      _
    $region29: #{tpu_custom_call.1} parent=1 // pred_fallthru
      _
    // Predicated region
    $region30: #{tpu_custom_call.1} parent=1 // pred_check
      _
    $region31: #{tpu_custom_call.1} parent=1 // pred_check_branch
      %40 = sbr.rel (0) target = $region33
    $region32: #{tpu_custom_call.1} parent=1 // pred_region
      _
    $region33: #{tpu_custom_call.1} parent=1 // pred_fallthru
      _
    // Predicated region
    $region34: #{tpu_custom_call.1} parent=1 // pred_check
      _
    $region35: #{tpu_custom_call.1} parent=1 // pred_check_branch
      %42 = sbr.rel (0) target = $region37
    $region36: #{tpu_custom_call.1} parent=1 // pred_region
      _
    $region37: #{tpu_custom_call.1} parent=1 // pred_fallthru
      _
    // Predicated region
    $region38: #{tpu_custom_call.1} parent=1 // pred_check
      _
    $region39: #{tpu_custom_call.1} parent=1 // pred_check_branch
      %44 = sbr.rel (0) target = $region41
    $region40: #{tpu_custom_call.1} parent=1 // pred_region
      _
    $region41: #{tpu_custom_call.1} parent=1 // pred_fallthru
      _
    // Predicated region
    $region42: #{tpu_custom_call.1} parent=1 // pred_check
      _
    $region43: #{tpu_custom_call.1} parent=1 // pred_check_branch
      %46 = sbr.rel (0) target = $region45
    $region44: #{tpu_custom_call.1} parent=1 // pred_region
      %47 = dma.done [#allocation3], 128
    $region45: #{tpu_custom_call.1} parent=1 // pred_fallthru
      _
    %v48 = vld [vmem:[#allocation2] sm:$0xff]
    %v49 = vld [vmem:[%s1] sm:$0xff]
    %v50 = vld [vmem:[%s1 + $0x8] sm:$0xff]
    %v51 = vld [vmem:[%s2] sm:$0x1]
    %v53 = vlaneseq
    %v54 = vshrl.u32 %v53, 7
    %v55 = vsub.s32 0, %v54
    %v56 = vrot.slane %v51, %v55
    %vm58 = vcmask 130048
    %v60 = vsel %vm58, %v48, 0
    %62 = vmatprep.subr.mxu0 0.0
    %63 = vmatpush1.msra.mxu0 %v49
    %64 = vmatprep.subr.mxu0 0.0
    %65 = vmatpush1.msra.mxu0 %v50
    %66 = vmatprep.subr.mxu0 0.0
    %67 = vmatpush1.msra.mxu0 0.0
    %68 = vmatprep.subr.mxu0 0.0
    %69 = vmatpush1.msra.mxu0 0.0
    %70 = vmatprep.subr.mxu0 0.0
    %71 = vmatpush1.msra.mxu0 0.0
    %72 = vmatprep.subr.mxu0 0.0
    %73 = vmatpush1.msra.mxu0 0.0
    %74 = vmatprep.subr.mxu0 0.0
    %75 = vmatpush1.msra.mxu0 0.0
    %76 = vmatprep.subr.mxu0 0.0
    %77 = vmatpush1.msra.mxu0 0.0
    %78 = vmatprep.subr.mxu0 0.0
    %79 = vmatpush1.msra.mxu0 0.0
    %80 = vmatprep.subr.mxu0 0.0
    %81 = vmatpush1.msra.mxu0 0.0
    %82 = vmatprep.subr.mxu0 0.0
    %83 = vmatpush1.msra.mxu0 0.0
    %84 = vmatprep.subr.mxu0 0.0
    %85 = vmatpush1.msra.mxu0 0.0
    %86 = vmatprep.subr.mxu0 0.0
    %87 = vmatpush1.msra.mxu0 0.0
    %88 = vmatprep.subr.mxu0 0.0
    %89 = vmatpush1.msra.mxu0 0.0
    %90 = vmatprep.subr.mxu0 0.0
    %91 = vmatpush1.msra.mxu0 0.0
    %92 = vmatprep.subr.mxu0 0.0
    %93 = vmatpush1.msra.mxu0 0.0
    %94 = vmatprep.subr.mxu0 0.0
    %95 = vmatpush1.msra.mxu0 0.0
    %96 = vmatprep.subr.mxu0 0.0
    %97 = vmatpush1.msra.mxu0 0.0
    %98 = vmatprep.subr.mxu0 0.0
    %99 = vmatpush1.msra.mxu0 0.0
    %100 = vmatprep.subr.mxu0 0.0
    %101 = vmatpush1.msra.mxu0 0.0
    %102 = vmatprep.subr.mxu0 0.0
    %103 = vmatpush1.msra.mxu0 0.0
    %104 = vmatprep.subr.mxu0 0.0
    %105 = vmatpush1.msra.mxu0 0.0
    %106 = vmatprep.subr.mxu0 0.0
    %107 = vmatpush1.msra.mxu0 0.0
    %108 = vmatprep.subr.mxu0 0.0
    %109 = vmatpush1.msra.mxu0 0.0
    %110 = vmatprep.subr.mxu0 0.0
    %111 = vmatpush1.msra.mxu0 0.0
    %112 = vmatprep.subr.mxu0 0.0
    %113 = vmatpush1.msra.mxu0 0.0
    %114 = vmatprep.subr.mxu0 0.0
    %115 = vmatpush1.msra.mxu0 0.0
    %116 = vmatprep.subr.mxu0 0.0
    %117 = vmatpush1.msra.mxu0 0.0
    %118 = vmatprep.subr.mxu0 0.0
    %119 = vmatpush1.msra.mxu0 0.0
    %120 = vmatprep.subr.mxu0 0.0
    %121 = vmatpush1.msra.mxu0 0.0
    %122 = vmatprep.subr.mxu0 0.0
    %123 = vmatpush1.msra.mxu0 0.0
    %124 = vmatprep.subr.mxu0 0.0
    %125 = vmatpush1.msra.mxu0 0.0
    %126 = vmatprep.mubr.f32.mxu0 0.0
    %127 = vmatmul.mubr.f32.gmra.mrb[0].mxu0 %v60
    %v128 = vpop.f32.mrb[0].mxu0
    %v129 = vadd.f32 %v56, %v128
    %v130 = vpop.f32.mrb[0].mxu0
    %131 = vdwg.mxu0
    %132 = vadd.xlane.f32.xlu0 %v129
    %v133 = vpop.xlane.xlu0 %132
    %v134 = vmul.f32 %v133, 0.03125
    %v135 = vsub.f32 %v129, %v134
    %v136 = vmul.f32 %v135, %v135
    %137 = vadd.xlane.f32.xlu0 %v136
    %v138 = vpop.xlane.xlu0 %137
    %v139 = vmul.f32 %v134, %v134
    %v140 = vmul.f32 %v139, 96.0
    %v141 = vsub.f32 %v138, %v140
    %v142 = vmul.f32 %v141, 0.03125
    %v143 = vadd.f32 %v142, 1e-05
    %v144 = vrsqrt.pop %v143
    %v145 = vmul.f32 %v135, %v144
    %v146 = vld [vmem:[%s3] sm:$0x1]
    %v148 = vlaneseq
    %v149 = vshrl.u32 %v148, 7
    %v150 = vsub.s32 0, %v149
    %v151 = vrot.slane %v146, %v150
    %v153 = vmul.f32 %v145, %v151
    %v154 = vld [vmem:[%s4] sm:$0x1]
    %v156 = vlaneseq
    %v157 = vshrl.u32 %v156, 7
    %v158 = vsub.s32 0, %v157
    %v159 = vrot.slane %v154, %v158
    %v161 = vadd.f32 %v153, %v159
    %v162 = vmax.f32 %v161, 0.0
    %v163 = vld [vmem:[%s5] sm:$0xff]
    %v164 = vld [vmem:[%s5 + $0x8] sm:$0xff]
    %v165 = vld [vmem:[%s5 + $0x10] sm:$0xff]
    %v166 = vld [vmem:[%s5 + $0x18] sm:$0xff]
    %v167 = vld [vmem:[%s5 + $0x20] sm:$0xff]
    %v168 = vld [vmem:[%s5 + $0x28] sm:$0xff]
    %v169 = vld [vmem:[%s5 + $0x30] sm:$0xff]
    %v170 = vld [vmem:[%s5 + $0x38] sm:$0xff]
    %v171 = vld [vmem:[%s5 + $0x40] sm:$0xff]
    %v172 = vld [vmem:[%s5 + $0x48] sm:$0xff]
    %v173 = vld [vmem:[%s5 + $0x50] sm:$0xff]
    %v174 = vld [vmem:[%s5 + $0x58] sm:$0xff]
    %v175 = vld [vmem:[%s5 + $0x60] sm:$0xff]
    %v176 = vld [vmem:[%s5 + $0x68] sm:$0xff]
    %v177 = vld [vmem:[%s5 + $0x70] sm:$0xff]
    %v178 = vld [vmem:[%s5 + $0x78] sm:$0xff]
    %v179 = vld [vmem:[%s6] sm:$0x1]
    %v181 = vlaneseq
    %v182 = vshrl.u32 %v181, 7
    %v183 = vsub.s32 0, %v182
    %v184 = vrot.slane %v179, %v183
    %186 = vmatprep.subr.mxu0 0.0
    %187 = vmatpush1.msra.mxu0 %v163
    %188 = vmatprep.subr.mxu0 0.0
    %189 = vmatpush1.msra.mxu0 %v164
    %190 = vmatprep.subr.mxu0 0.0
    %191 = vmatpush1.msra.mxu0 %v165
    %192 = vmatprep.subr.mxu0 0.0
    %193 = vmatpush1.msra.mxu0 %v166
    %194 = vmatprep.subr.mxu0 0.0
    %195 = vmatpush1.msra.mxu0 %v167
    %196 = vmatprep.subr.mxu0 0.0
    %197 = vmatpush1.msra.mxu0 %v168
    %198 = vmatprep.subr.mxu0 0.0
    %199 = vmatpush1.msra.mxu0 %v169
    %200 = vmatprep.subr.mxu0 0.0
    %201 = vmatpush1.msra.mxu0 %v170
    %202 = vmatprep.subr.mxu0 0.0
    %203 = vmatpush1.msra.mxu0 %v171
    %204 = vmatprep.subr.mxu0 0.0
    %205 = vmatpush1.msra.mxu0 %v172
    %206 = vmatprep.subr.mxu0 0.0
    %207 = vmatpush1.msra.mxu0 %v173
    %208 = vmatprep.subr.mxu0 0.0
    %209 = vmatpush1.msra.mxu0 %v174
    %210 = vmatprep.subr.mxu0 0.0
    %211 = vmatpush1.msra.mxu0 %v175
    %212 = vmatprep.subr.mxu0 0.0
    %213 = vmatpush1.msra.mxu0 %v176
    %214 = vmatprep.subr.mxu0 0.0
    %215 = vmatpush1.msra.mxu0 %v177
    %216 = vmatprep.subr.mxu0 0.0
    %217 = vmatpush1.msra.mxu0 %v178
    %218 = vmatprep.subr.mxu0 0.0
    %219 = vmatpush1.msra.mxu0 0.0
    %220 = vmatprep.subr.mxu0 0.0
    %221 = vmatpush1.msra.mxu0 0.0
    %222 = vmatprep.subr.mxu0 0.0
    %223 = vmatpush1.msra.mxu0 0.0
    %224 = vmatprep.subr.mxu0 0.0
    %225 = vmatpush1.msra.mxu0 0.0
    %226 = vmatprep.subr.mxu0 0.0
    %227 = vmatpush1.msra.mxu0 0.0
    %228 = vmatprep.subr.mxu0 0.0
    %229 = vmatpush1.msra.mxu0 0.0
    %230 = vmatprep.subr.mxu0 0.0
    %231 = vmatpush1.msra.mxu0 0.0
    %232 = vmatprep.subr.mxu0 0.0
    %233 = vmatpush1.msra.mxu0 0.0
    %234 = vmatprep.subr.mxu0 0.0
    %235 = vmatpush1.msra.mxu0 0.0
    %236 = vmatprep.subr.mxu0 0.0
    %237 = vmatpush1.msra.mxu0 0.0
    %238 = vmatprep.subr.mxu0 0.0
    %239 = vmatpush1.msra.mxu0 0.0
    %240 = vmatprep.subr.mxu0 0.0
    %241 = vmatpush1.msra.mxu0 0.0
    %242 = vmatprep.subr.mxu0 0.0
    %243 = vmatpush1.msra.mxu0 0.0
    %244 = vmatprep.subr.mxu0 0.0
    %245 = vmatpush1.msra.mxu0 0.0
    %246 = vmatprep.subr.mxu0 0.0
    %247 = vmatpush1.msra.mxu0 0.0
    %248 = vmatprep.subr.mxu0 0.0
    %249 = vmatpush1.msra.mxu0 0.0
    %250 = vmatprep.mubr.f32.mxu0 0.0
    %251 = vmatmul.mubr.f32.gmra.mrb[0].mxu0 %v162
    %v252 = vpop.f32.mrb[0].mxu0
    %v253 = vadd.f32 %v184, %v252
    %v254 = vpop.f32.mrb[0].mxu0
    %255 = vdwg.mxu0
    %v256 = vmax.f32 %v253, 0.0
    %v257 = vld [vmem:[%s7] sm:$0xff]
    %v258 = vld [vmem:[%s7 + $0x8] sm:$0xff]
    %v259 = vld [vmem:[%s7 + $0x10] sm:$0xff]
    %v260 = vld [vmem:[%s7 + $0x18] sm:$0xff]
    %v261 = vld [vmem:[%s7 + $0x20] sm:$0xff]
    %v262 = vld [vmem:[%s7 + $0x28] sm:$0xff]
    %v263 = vld [vmem:[%s7 + $0x30] sm:$0xff]
    %v264 = vld [vmem:[%s7 + $0x38] sm:$0xff]
    %v265 = vld [vmem:[%s7 + $0x40] sm:$0xff]
    %v266 = vld [vmem:[%s7 + $0x48] sm:$0xff]
    %v267 = vld [vmem:[%s7 + $0x50] sm:$0xff]
    %v268 = vld [vmem:[%s7 + $0x58] sm:$0xff]
    %v269 = vld [vmem:[%s7 + $0x60] sm:$0xff]
    %v270 = vld [vmem:[%s7 + $0x68] sm:$0xff]
    %v271 = vld [vmem:[%s7 + $0x70] sm:$0xff]
    %v272 = vld [vmem:[%s7 + $0x78] sm:$0xff]
    %v273 = vld [vmem:[%s8] sm:$0x1]
    %v275 = vlaneseq
    %v276 = vshrl.u32 %v275, 7
    %v277 = vsub.s32 0, %v276
    %v278 = vrot.slane %v273, %v277
    %280 = vmatprep.subr.mxu0 0.0
    %281 = vmatpush1.msra.mxu0 %v257
    %282 = vmatprep.subr.mxu0 0.0
    %283 = vmatpush1.msra.mxu0 %v258
    %284 = vmatprep.subr.mxu0 0.0
    %285 = vmatpush1.msra.mxu0 %v259
    %286 = vmatprep.subr.mxu0 0.0
    %287 = vmatpush1.msra.mxu0 %v260
    %288 = vmatprep.subr.mxu0 0.0
    %289 = vmatpush1.msra.mxu0 %v261
    %290 = vmatprep.subr.mxu0 0.0
    %291 = vmatpush1.msra.mxu0 %v262
    %292 = vmatprep.subr.mxu0 0.0
    %293 = vmatpush1.msra.mxu0 %v263
    %294 = vmatprep.subr.mxu0 0.0
    %295 = vmatpush1.msra.mxu0 %v264
    %296 = vmatprep.subr.mxu0 0.0
    %297 = vmatpush1.msra.mxu0 %v265
    %298 = vmatprep.subr.mxu0 0.0
    %299 = vmatpush1.msra.mxu0 %v266
    %300 = vmatprep.subr.mxu0 0.0
    %301 = vmatpush1.msra.mxu0 %v267
    %302 = vmatprep.subr.mxu0 0.0
    %303 = vmatpush1.msra.mxu0 %v268
    %304 = vmatprep.subr.mxu0 0.0
    %305 = vmatpush1.msra.mxu0 %v269
    %306 = vmatprep.subr.mxu0 0.0
    %307 = vmatpush1.msra.mxu0 %v270
    %308 = vmatprep.subr.mxu0 0.0
    %309 = vmatpush1.msra.mxu0 %v271
    %310 = vmatprep.subr.mxu0 0.0
    %311 = vmatpush1.msra.mxu0 %v272
    %312 = vmatprep.subr.mxu0 0.0
    %313 = vmatpush1.msra.mxu0 0.0
    %314 = vmatprep.subr.mxu0 0.0
    %315 = vmatpush1.msra.mxu0 0.0
    %316 = vmatprep.subr.mxu0 0.0
    %317 = vmatpush1.msra.mxu0 0.0
    %318 = vmatprep.subr.mxu0 0.0
    %319 = vmatpush1.msra.mxu0 0.0
    %320 = vmatprep.subr.mxu0 0.0
    %321 = vmatpush1.msra.mxu0 0.0
    %322 = vmatprep.subr.mxu0 0.0
    %323 = vmatpush1.msra.mxu0 0.0
    %324 = vmatprep.subr.mxu0 0.0
    %325 = vmatpush1.msra.mxu0 0.0
    %326 = vmatprep.subr.mxu0 0.0
    %327 = vmatpush1.msra.mxu0 0.0
    %328 = vmatprep.subr.mxu0 0.0
    %329 = vmatpush1.msra.mxu0 0.0
    %330 = vmatprep.subr.mxu0 0.0
    %331 = vmatpush1.msra.mxu0 0.0
    %332 = vmatprep.subr.mxu0 0.0
    %333 = vmatpush1.msra.mxu0 0.0
    %334 = vmatprep.subr.mxu0 0.0
    %335 = vmatpush1.msra.mxu0 0.0
    %336 = vmatprep.subr.mxu0 0.0
    %337 = vmatpush1.msra.mxu0 0.0
    %338 = vmatprep.subr.mxu0 0.0
    %339 = vmatpush1.msra.mxu0 0.0
    %340 = vmatprep.subr.mxu0 0.0
    %341 = vmatpush1.msra.mxu0 0.0
    %342 = vmatprep.subr.mxu0 0.0
    %343 = vmatpush1.msra.mxu0 0.0
    %344 = vmatprep.mubr.f32.mxu0 0.0
    %345 = vmatmul.mubr.f32.gmra.mrb[0].mxu0 %v256
    %v346 = vpop.f32.mrb[0].mxu0
    %v347 = vadd.f32 %v278, %v346
    %v348 = vpop.f32.mrb[0].mxu0
    %349 = vdwg.mxu0
    %v350 = vmul.f32 %v347, %v347
    %vm351 = vcmask 64512
    %v352 = vsel %vm351, %v350, 0.0
    %353 = vadd.xlane.f32.xlu0 %v352
    %v354 = vpop.xlane.xlu0 %353
    %v355 = vmax.f32 %v354, 1e-24
    %v356 = vrsqrt.pop %v355
    %v357 = vmul.f32 %v356, 2.828427
    %v358 = vmul.f32 %v347, %v357
    %v359 = vld [vmem:[%s9] sm:$0x1]
    %v361 = vlaneseq
    %v362 = vshrl.u32 %v361, 7
    %v363 = vsub.s32 0, %v362
    %v364 = vrot.slane %v359, %v363
    %v366 = vsub.f32 %v358, %v364
    %367 = vst.msk [vmem:[#allocation5] sm:$0xff] %vm351, %v366
    // Predicated region
    $region46: #{tpu_custom_call.1} parent=1 // pred_check
      _
    $region47: #{tpu_custom_call.1} parent=1 // pred_check_branch
      %369 = sbr.rel (0) target = $region49
    $region48: #{tpu_custom_call.1} parent=1 // pred_region
      %s371 = ssub.s32 128, 128
      %372 = vsyncadd [#allocation4], %s371
      %s374 = sshll.u32 [#allocation5], 4
      %s375 = int_to_ptr.vmem [resolvable:$true] %s374
      %377 = dma.vmem_to_hbm [thread:$0]  %s375, 128, %s10, [#allocation4]
    $region49: #{tpu_custom_call.1} parent=1 // pred_fallthru
      _
    // Predicated region
    $region50: #{tpu_custom_call.1} parent=1 // pred_check
      _
    $region51: #{tpu_custom_call.1} parent=1 // pred_check_branch
      %379 = sbr.rel (0) target = $region53
    $region52: #{tpu_custom_call.1} parent=1 // pred_region
      %380 = dma.done [#allocation4], 128
    $region53: #{tpu_custom_call.1} parent=1 // pred_fallthru
      _
    %381 = vsyncpa [#allocation3], 1
    %382 = vsyncpa [#allocation4], 1

// kernel: tpu_custom_call.1
$region0: #{tpu_custom_call.1}
  #allocation0 [shape = 'u32[]', space=smem, size = 0x4, offset = 0x4, fixed_abs, tag = 'smem constant byte address 0x4 - core index']
  #allocation1 [shape = 'u32[144,128]{1,0:T(1,128)}', space=vmem, size = 0x12000, scoped, tag = 'internal scratch']
  %s0 = inlined_call_operand.hbm [shape: f32[8,16], index: 0, kind: input, shape index: {}]
  %s1 = inlined_call_operand.vmem [shape: f32[16,128], index: 1, kind: input, shape index: {}]
  %s2 = inlined_call_operand.vmem [shape: f32[1,128], index: 2, kind: input, shape index: {}]
  %s3 = inlined_call_operand.vmem [shape: f32[1,128], index: 3, kind: input, shape index: {}]
  %s4 = inlined_call_operand.vmem [shape: f32[1,128], index: 4, kind: input, shape index: {}]
  %s5 = inlined_call_operand.vmem [shape: f32[128,128], index: 5, kind: input, shape index: {}]
  %s6 = inlined_call_operand.vmem [shape: f32[1,128], index: 6, kind: input, shape index: {}]
  %s7 = inlined_call_operand.vmem [shape: f32[128,8], index: 7, kind: input, shape index: {}]
  %s8 = inlined_call_operand.vmem [shape: f32[1,8], index: 8, kind: input, shape index: {}]
  %s9 = inlined_call_operand.vmem [shape: f32[1,8], index: 9, kind: input, shape index: {}]
  %s10 = inlined_call_operand.hbm [shape: f32[8,8], index: 10, kind: output, shape index: {}]
  %s11 = sld [smem:[#allocation0]]
  $region54: #{tpu_custom_call.1} parent=0
    _
  %s13 = ssub.s32 1, %s11
  %s14 = scalar_select 0, %s13, %s11
  $region1: #{tpu_custom_call.1} parent=0
    #allocation2 [shape = 'u8[4096]{0}', space=vmem, size = 0x1000, scoped, tag = 'input window, operand 0, single buffered']
    #allocation3 [shape = 's32[1]{0}', space=sflag, size = 0x4, scoped, tag = 'scoped memory for tpu_custom_call.1']
    #allocation4 [shape = 's32[1]{0}', space=sflag, size = 0x4, scoped, tag = 'scoped memory for tpu_custom_call.1']
    #allocation5 [shape = 'u8[4096]{0}', space=vmem, size = 0x1000, scoped, tag = 'output window, operand 0, single buffered']
    %15 = vsyncpa [#allocation3], 0
    %16 = vsyncpa [#allocation4], 0
    // Predicated region
    $region2: #{tpu_custom_call.1} parent=1 // pred_check
      _
    $region3: #{tpu_custom_call.1} parent=1 // pred_check_branch
      %18 = sbr.rel (0) target = $region5
    $region4: #{tpu_custom_call.1} parent=1 // pred_region
      %s20 = ssub.s32 128, 128
      %21 = vsyncadd [#allocation3], %s20
      %s23 = sshll.u32 [#allocation2], 4
      %s24 = int_to_ptr.vmem [resolvable:$true] %s23
      %26 = dma.hbm_to_vmem [thread:$0]  %s0, 128, %s24, [#allocation3]
    $region5: #{tpu_custom_call.1} parent=1 // pred_fallthru
      _
    // Predicated region
    $region6: #{tpu_custom_call.1} parent=1 // pred_check
      _
    $region7: #{tpu_custom_call.1} parent=1 // pred_check_branch
      %28 = sbr.rel (0) target = $region9
    $region8: #{tpu_custom_call.1} parent=1 // pred_region
      _
    $region9: #{tpu_custom_call.1} parent=1 // pred_fallthru
      _
    // Predicated region
    $region10: #{tpu_custom_call.1} parent=1 // pred_check
      _
    $region11: #{tpu_custom_call.1} parent=1 // pred_check_branch
      %30 = sbr.rel (0) target = $region13
    $region12: #{tpu_custom_call.1} parent=1 // pred_region
      _
    $region13: #{tpu_custom_call.1} parent=1 // pred_fallthru
      _
    // Predicated region
    $region14: #{tpu_custom_call.1} parent=1 // pred_check
      _
    $region15: #{tpu_custom_call.1} parent=1 // pred_check_branch
      %32 = sbr.rel (0) target = $region17
    $region16: #{tpu_custom_call.1} parent=1 // pred_region
      _
    $region17: #{tpu_custom_call.1} parent=1 // pred_fallthru
      _
    // Predicated region
    $region18: #{tpu_custom_call.1} parent=1 // pred_check
      _
    $region19: #{tpu_custom_call.1} parent=1 // pred_check_branch
      %34 = sbr.rel (0) target = $region21
    $region20: #{tpu_custom_call.1} parent=1 // pred_region
      _
    $region21: #{tpu_custom_call.1} parent=1 // pred_fallthru
      _
    // Predicated region
    $region22: #{tpu_custom_call.1} parent=1 // pred_check
      _
    $region23: #{tpu_custom_call.1} parent=1 // pred_check_branch
      %36 = sbr.rel (0) target = $region25
    $region24: #{tpu_custom_call.1} parent=1 // pred_region
      _
    $region25: #{tpu_custom_call.1} parent=1 // pred_fallthru
      _
    // Predicated region
    $region26: #{tpu_custom_call.1} parent=1 // pred_check
      _
    $region27: #{tpu_custom_call.1} parent=1 // pred_check_branch
      %38 = sbr.rel (0) target = $region29
    $region28: #{tpu_custom_call.1} parent=1 // pred_region
      _
    $region29: #{tpu_custom_call.1} parent=1 // pred_fallthru
      _
    // Predicated region
    $region30: #{tpu_custom_call.1} parent=1 // pred_check
      _
    $region31: #{tpu_custom_call.1} parent=1 // pred_check_branch
      %40 = sbr.rel (0) target = $region33
    $region32: #{tpu_custom_call.1} parent=1 // pred_region
      _
    $region33: #{tpu_custom_call.1} parent=1 // pred_fallthru
      _
    // Predicated region
    $region34: #{tpu_custom_call.1} parent=1 // pred_check
      _
    $region35: #{tpu_custom_call.1} parent=1 // pred_check_branch
      %42 = sbr.rel (0) target = $region37
    $region36: #{tpu_custom_call.1} parent=1 // pred_region
      _
    $region37: #{tpu_custom_call.1} parent=1 // pred_fallthru
      _
    // Predicated region
    $region38: #{tpu_custom_call.1} parent=1 // pred_check
      _
    $region39: #{tpu_custom_call.1} parent=1 // pred_check_branch
      %44 = sbr.rel (0) target = $region41
    $region40: #{tpu_custom_call.1} parent=1 // pred_region
      _
    $region41: #{tpu_custom_call.1} parent=1 // pred_fallthru
      _
    // Predicated region
    $region42: #{tpu_custom_call.1} parent=1 // pred_check
      _
    $region43: #{tpu_custom_call.1} parent=1 // pred_check_branch
      %46 = sbr.rel (0) target = $region45
    $region44: #{tpu_custom_call.1} parent=1 // pred_region
      %47 = dma.done [#allocation3], 128
    $region45: #{tpu_custom_call.1} parent=1 // pred_fallthru
      _
    %v48 = vld [vmem:[#allocation2] sm:$0xff]
    %v49 = vld [vmem:[%s1] sm:$0xff]
    %v50 = vld [vmem:[%s1 + $0x8] sm:$0xff]
    %v51 = vld [vmem:[%s2] sm:$0x1]
    %v53 = vlaneseq
    %v54 = vshrl.u32 %v53, 7
    %v55 = vsub.s32 0, %v54
    %v56 = vrot.slane %v51, %v55
    %vm58 = vcmask 130048
    %v60 = vsel %vm58, %v48, 0
    %62 = vmatprep.subr.mxu0 0.0
    %63 = vmatpush1.msra.mxu0 %v49
    %64 = vmatprep.subr.mxu0 0.0
    %65 = vmatpush1.msra.mxu0 %v50
    %66 = vmatprep.subr.mxu0 0.0
    %67 = vmatpush1.msra.mxu0 0.0
    %68 = vmatprep.subr.mxu0 0.0
    %69 = vmatpush1.msra.mxu0 0.0
    %70 = vmatprep.subr.mxu0 0.0
    %71 = vmatpush1.msra.mxu0 0.0
    %72 = vmatprep.subr.mxu0 0.0
    %73 = vmatpush1.msra.mxu0 0.0
    %74 = vmatprep.subr.mxu0 0.0
    %75 = vmatpush1.msra.mxu0 0.0
    %76 = vmatprep.subr.mxu0 0.0
    %77 = vmatpush1.msra.mxu0 0.0
    %78 = vmatprep.subr.mxu0 0.0
    %79 = vmatpush1.msra.mxu0 0.0
    %80 = vmatprep.subr.mxu0 0.0
    %81 = vmatpush1.msra.mxu0 0.0
    %82 = vmatprep.subr.mxu0 0.0
    %83 = vmatpush1.msra.mxu0 0.0
    %84 = vmatprep.subr.mxu0 0.0
    %85 = vmatpush1.msra.mxu0 0.0
    %86 = vmatprep.subr.mxu0 0.0
    %87 = vmatpush1.msra.mxu0 0.0
    %88 = vmatprep.subr.mxu0 0.0
    %89 = vmatpush1.msra.mxu0 0.0
    %90 = vmatprep.subr.mxu0 0.0
    %91 = vmatpush1.msra.mxu0 0.0
    %92 = vmatprep.subr.mxu0 0.0
    %93 = vmatpush1.msra.mxu0 0.0
    %94 = vmatprep.subr.mxu0 0.0
    %95 = vmatpush1.msra.mxu0 0.0
    %96 = vmatprep.subr.mxu0 0.0
    %97 = vmatpush1.msra.mxu0 0.0
    %98 = vmatprep.subr.mxu0 0.0
    %99 = vmatpush1.msra.mxu0 0.0
    %100 = vmatprep.subr.mxu0 0.0
    %101 = vmatpush1.msra.mxu0 0.0
    %102 = vmatprep.subr.mxu0 0.0
    %103 = vmatpush1.msra.mxu0 0.0
    %104 = vmatprep.subr.mxu0 0.0
    %105 = vmatpush1.msra.mxu0 0.0
    %106 = vmatprep.subr.mxu0 0.0
    %107 = vmatpush1.msra.mxu0 0.0
    %108 = vmatprep.subr.mxu0 0.0
    %109 = vmatpush1.msra.mxu0 0.0
    %110 = vmatprep.subr.mxu0 0.0
    %111 = vmatpush1.msra.mxu0 0.0
    %112 = vmatprep.subr.mxu0 0.0
    %113 = vmatpush1.msra.mxu0 0.0
    %114 = vmatprep.subr.mxu0 0.0
    %115 = vmatpush1.msra.mxu0 0.0
    %116 = vmatprep.subr.mxu0 0.0
    %117 = vmatpush1.msra.mxu0 0.0
    %118 = vmatprep.subr.mxu0 0.0
    %119 = vmatpush1.msra.mxu0 0.0
    %120 = vmatprep.subr.mxu0 0.0
    %121 = vmatpush1.msra.mxu0 0.0
    %122 = vmatprep.subr.mxu0 0.0
    %123 = vmatpush1.msra.mxu0 0.0
    %124 = vmatprep.subr.mxu0 0.0
    %125 = vmatpush1.msra.mxu0 0.0
    %126 = vmatprep.mubr.f32.mxu0 0.0
    %127 = vmatmul.mubr.f32.gmra.mrb[0].mxu0 %v60
    %v128 = vpop.f32.mrb[0].mxu0
    %v129 = vadd.f32 %v56, %v128
    %v130 = vpop.f32.mrb[0].mxu0
    %131 = vdwg.mxu0
    %132 = vadd.xlane.f32.xlu0 %v129
    %v133 = vpop.xlane.xlu0 %132
    %v134 = vmul.f32 %v133, 0.03125
    %v135 = vsub.f32 %v129, %v134
    %v136 = vmul.f32 %v135, %v135
    %137 = vadd.xlane.f32.xlu0 %v136
    %v138 = vpop.xlane.xlu0 %137
    %v139 = vmul.f32 %v134, %v134
    %v140 = vmul.f32 %v139, 96.0
    %v141 = vsub.f32 %v138, %v140
    %v142 = vmul.f32 %v141, 0.03125
    %v143 = vadd.f32 %v142, 1e-05
    %v144 = vrsqrt.pop %v143
    %v145 = vmul.f32 %v135, %v144
    %v146 = vld [vmem:[%s3] sm:$0x1]
    %v148 = vlaneseq
    %v149 = vshrl.u32 %v148, 7
    %v150 = vsub.s32 0, %v149
    %v151 = vrot.slane %v146, %v150
    %v153 = vmul.f32 %v145, %v151
    %v154 = vld [vmem:[%s4] sm:$0x1]
    %v156 = vlaneseq
    %v157 = vshrl.u32 %v156, 7
    %v158 = vsub.s32 0, %v157
    %v159 = vrot.slane %v154, %v158
    %v161 = vadd.f32 %v153, %v159
    %v162 = vmax.f32 %v161, 0.0
    %v163 = vld [vmem:[%s5] sm:$0xff]
    %v164 = vld [vmem:[%s5 + $0x8] sm:$0xff]
    %v165 = vld [vmem:[%s5 + $0x10] sm:$0xff]
    %v166 = vld [vmem:[%s5 + $0x18] sm:$0xff]
    %v167 = vld [vmem:[%s5 + $0x20] sm:$0xff]
    %v168 = vld [vmem:[%s5 + $0x28] sm:$0xff]
    %v169 = vld [vmem:[%s5 + $0x30] sm:$0xff]
    %v170 = vld [vmem:[%s5 + $0x38] sm:$0xff]
    %v171 = vld [vmem:[%s5 + $0x40] sm:$0xff]
    %v172 = vld [vmem:[%s5 + $0x48] sm:$0xff]
    %v173 = vld [vmem:[%s5 + $0x50] sm:$0xff]
    %v174 = vld [vmem:[%s5 + $0x58] sm:$0xff]
    %v175 = vld [vmem:[%s5 + $0x60] sm:$0xff]
    %v176 = vld [vmem:[%s5 + $0x68] sm:$0xff]
    %v177 = vld [vmem:[%s5 + $0x70] sm:$0xff]
    %v178 = vld [vmem:[%s5 + $0x78] sm:$0xff]
    %v179 = vld [vmem:[%s6] sm:$0x1]
    %v181 = vlaneseq
    %v182 = vshrl.u32 %v181, 7
    %v183 = vsub.s32 0, %v182
    %v184 = vrot.slane %v179, %v183
    %186 = vmatprep.subr.mxu0 0.0
    %187 = vmatpush1.msra.mxu0 %v163
    %188 = vmatprep.subr.mxu0 0.0
    %189 = vmatpush1.msra.mxu0 %v164
    %190 = vmatprep.subr.mxu0 0.0
    %191 = vmatpush1.msra.mxu0 %v165
    %192 = vmatprep.subr.mxu0 0.0
    %193 = vmatpush1.msra.mxu0 %v166
    %194 = vmatprep.subr.mxu0 0.0
    %195 = vmatpush1.msra.mxu0 %v167
    %196 = vmatprep.subr.mxu0 0.0
    %197 = vmatpush1.msra.mxu0 %v168
    %198 = vmatprep.subr.mxu0 0.0
    %199 = vmatpush1.msra.mxu0 %v169
    %200 = vmatprep.subr.mxu0 0.0
    %201 = vmatpush1.msra.mxu0 %v170
    %202 = vmatprep.subr.mxu0 0.0
    %203 = vmatpush1.msra.mxu0 %v171
    %204 = vmatprep.subr.mxu0 0.0
    %205 = vmatpush1.msra.mxu0 %v172
    %206 = vmatprep.subr.mxu0 0.0
    %207 = vmatpush1.msra.mxu0 %v173
    %208 = vmatprep.subr.mxu0 0.0
    %209 = vmatpush1.msra.mxu0 %v174
    %210 = vmatprep.subr.mxu0 0.0
    %211 = vmatpush1.msra.mxu0 %v175
    %212 = vmatprep.subr.mxu0 0.0
    %213 = vmatpush1.msra.mxu0 %v176
    %214 = vmatprep.subr.mxu0 0.0
    %215 = vmatpush1.msra.mxu0 %v177
    %216 = vmatprep.subr.mxu0 0.0
    %217 = vmatpush1.msra.mxu0 %v178
    %218 = vmatprep.subr.mxu0 0.0
    %219 = vmatpush1.msra.mxu0 0.0
    %220 = vmatprep.subr.mxu0 0.0
    %221 = vmatpush1.msra.mxu0 0.0
    %222 = vmatprep.subr.mxu0 0.0
    %223 = vmatpush1.msra.mxu0 0.0
    %224 = vmatprep.subr.mxu0 0.0
    %225 = vmatpush1.msra.mxu0 0.0
    %226 = vmatprep.subr.mxu0 0.0
    %227 = vmatpush1.msra.mxu0 0.0
    %228 = vmatprep.subr.mxu0 0.0
    %229 = vmatpush1.msra.mxu0 0.0
    %230 = vmatprep.subr.mxu0 0.0
    %231 = vmatpush1.msra.mxu0 0.0
    %232 = vmatprep.subr.mxu0 0.0
    %233 = vmatpush1.msra.mxu0 0.0
    %234 = vmatprep.subr.mxu0 0.0
    %235 = vmatpush1.msra.mxu0 0.0
    %236 = vmatprep.subr.mxu0 0.0
    %237 = vmatpush1.msra.mxu0 0.0
    %238 = vmatprep.subr.mxu0 0.0
    %239 = vmatpush1.msra.mxu0 0.0
    %240 = vmatprep.subr.mxu0 0.0
    %241 = vmatpush1.msra.mxu0 0.0
    %242 = vmatprep.subr.mxu0 0.0
    %243 = vmatpush1.msra.mxu0 0.0
    %244 = vmatprep.subr.mxu0 0.0
    %245 = vmatpush1.msra.mxu0 0.0
    %246 = vmatprep.subr.mxu0 0.0
    %247 = vmatpush1.msra.mxu0 0.0
    %248 = vmatprep.subr.mxu0 0.0
    %249 = vmatpush1.msra.mxu0 0.0
    %250 = vmatprep.mubr.f32.mxu0 0.0
    %251 = vmatmul.mubr.f32.gmra.mrb[0].mxu0 %v162
    %v252 = vpop.f32.mrb[0].mxu0
    %v253 = vadd.f32 %v184, %v252
    %v254 = vpop.f32.mrb[0].mxu0
    %255 = vdwg.mxu0
    %v256 = vmax.f32 %v253, 0.0
    %v257 = vld [vmem:[%s7] sm:$0xff]
    %v258 = vld [vmem:[%s7 + $0x8] sm:$0xff]
    %v259 = vld [vmem:[%s7 + $0x10] sm:$0xff]
    %v260 = vld [vmem:[%s7 + $0x18] sm:$0xff]
    %v261 = vld [vmem:[%s7 + $0x20] sm:$0xff]
    %v262 = vld [vmem:[%s7 + $0x28] sm:$0xff]
    %v263 = vld [vmem:[%s7 + $0x30] sm:$0xff]
    %v264 = vld [vmem:[%s7 + $0x38] sm:$0xff]
    %v265 = vld [vmem:[%s7 + $0x40] sm:$0xff]
    %v266 = vld [vmem:[%s7 + $0x48] sm:$0xff]
    %v267 = vld [vmem:[%s7 + $0x50] sm:$0xff]
    %v268 = vld [vmem:[%s7 + $0x58] sm:$0xff]
    %v269 = vld [vmem:[%s7 + $0x60] sm:$0xff]
    %v270 = vld [vmem:[%s7 + $0x68] sm:$0xff]
    %v271 = vld [vmem:[%s7 + $0x70] sm:$0xff]
    %v272 = vld [vmem:[%s7 + $0x78] sm:$0xff]
    %v273 = vld [vmem:[%s8] sm:$0x1]
    %v275 = vlaneseq
    %v276 = vshrl.u32 %v275, 7
    %v277 = vsub.s32 0, %v276
    %v278 = vrot.slane %v273, %v277
    %280 = vmatprep.subr.mxu0 0.0
    %281 = vmatpush1.msra.mxu0 %v257
    %282 = vmatprep.subr.mxu0 0.0
    %283 = vmatpush1.msra.mxu0 %v258
    %284 = vmatprep.subr.mxu0 0.0
    %285 = vmatpush1.msra.mxu0 %v259
    %286 = vmatprep.subr.mxu0 0.0
    %287 = vmatpush1.msra.mxu0 %v260
    %288 = vmatprep.subr.mxu0 0.0
    %289 = vmatpush1.msra.mxu0 %v261
    %290 = vmatprep.subr.mxu0 0.0
    %291 = vmatpush1.msra.mxu0 %v262
    %292 = vmatprep.subr.mxu0 0.0
    %293 = vmatpush1.msra.mxu0 %v263
    %294 = vmatprep.subr.mxu0 0.0
    %295 = vmatpush1.msra.mxu0 %v264
    %296 = vmatprep.subr.mxu0 0.0
    %297 = vmatpush1.msra.mxu0 %v265
    %298 = vmatprep.subr.mxu0 0.0
    %299 = vmatpush1.msra.mxu0 %v266
    %300 = vmatprep.subr.mxu0 0.0
    %301 = vmatpush1.msra.mxu0 %v267
    %302 = vmatprep.subr.mxu0 0.0
    %303 = vmatpush1.msra.mxu0 %v268
    %304 = vmatprep.subr.mxu0 0.0
    %305 = vmatpush1.msra.mxu0 %v269
    %306 = vmatprep.subr.mxu0 0.0
    %307 = vmatpush1.msra.mxu0 %v270
    %308 = vmatprep.subr.mxu0 0.0
    %309 = vmatpush1.msra.mxu0 %v271
    %310 = vmatprep.subr.mxu0 0.0
    %311 = vmatpush1.msra.mxu0 %v272
    %312 = vmatprep.subr.mxu0 0.0
    %313 = vmatpush1.msra.mxu0 0.0
    %314 = vmatprep.subr.mxu0 0.0
    %315 = vmatpush1.msra.mxu0 0.0
    %316 = vmatprep.subr.mxu0 0.0
    %317 = vmatpush1.msra.mxu0 0.0
    %318 = vmatprep.subr.mxu0 0.0
    %319 = vmatpush1.msra.mxu0 0.0
    %320 = vmatprep.subr.mxu0 0.0
    %321 = vmatpush1.msra.mxu0 0.0
    %322 = vmatprep.subr.mxu0 0.0
    %323 = vmatpush1.msra.mxu0 0.0
    %324 = vmatprep.subr.mxu0 0.0
    %325 = vmatpush1.msra.mxu0 0.0
    %326 = vmatprep.subr.mxu0 0.0
    %327 = vmatpush1.msra.mxu0 0.0
    %328 = vmatprep.subr.mxu0 0.0
    %329 = vmatpush1.msra.mxu0 0.0
    %330 = vmatprep.subr.mxu0 0.0
    %331 = vmatpush1.msra.mxu0 0.0
    %332 = vmatprep.subr.mxu0 0.0
    %333 = vmatpush1.msra.mxu0 0.0
    %334 = vmatprep.subr.mxu0 0.0
    %335 = vmatpush1.msra.mxu0 0.0
    %336 = vmatprep.subr.mxu0 0.0
    %337 = vmatpush1.msra.mxu0 0.0
    %338 = vmatprep.subr.mxu0 0.0
    %339 = vmatpush1.msra.mxu0 0.0
    %340 = vmatprep.subr.mxu0 0.0
    %341 = vmatpush1.msra.mxu0 0.0
    %342 = vmatprep.subr.mxu0 0.0
    %343 = vmatpush1.msra.mxu0 0.0
    %344 = vmatprep.mubr.f32.mxu0 0.0
    %345 = vmatmul.mubr.f32.gmra.mrb[0].mxu0 %v256
    %v346 = vpop.f32.mrb[0].mxu0
    %v347 = vadd.f32 %v278, %v346
    %v348 = vpop.f32.mrb[0].mxu0
    %349 = vdwg.mxu0
    %v350 = vmul.f32 %v347, %v347
    %vm351 = vcmask 64512
    %v352 = vsel %vm351, %v350, 0.0
    %353 = vadd.xlane.f32.xlu0 %v352
    %v354 = vpop.xlane.xlu0 %353
    %v355 = vmax.f32 %v354, 1e-24
    %v356 = vrsqrt.pop %v355
    %v357 = vmul.f32 %v356, 2.828427
    %v358 = vmul.f32 %v347, %v357
    %v359 = vld [vmem:[%s9] sm:$0x1]
    %v361 = vlaneseq
    %v362 = vshrl.u32 %v361, 7
    %v363 = vsub.s32 0, %v362
    %v364 = vrot.slane %v359, %v363
    %v366 = vsub.f32 %v358, %v364
    %367 = vst.msk [vmem:[#allocation5] sm:$0xff] %vm351, %v366
    // Predicated region
    $region46: #{tpu_custom_call.1} parent=1 // pred_check
      _
    $region47: #{tpu_custom_call.1} parent=1 // pred_check_branch
      %369 = sbr.rel (0) target = $region49
    $region48: #{tpu_custom_call.1} parent=1 // pred_region
      %s371 = ssub.s32 128, 128
      %372 = vsyncadd [#allocation4], %s371
      %s374 = sshll.u32 [#allocation5], 4
      %s375 = int_to_ptr.vmem [resolvable:$true] %s374
      %377 = dma.vmem_to_hbm [thread:$0]  %s375, 128, %s10, [#allocation4]
    $region49: #{tpu_custom_call.1} parent=1 // pred_fallthru
      _
    // Predicated region
    $region50: #{tpu_custom_call.1} parent=1 // pred_check
      _
    $region51: #{tpu_custom_call.1} parent=1 // pred_check_branch
      %379 = sbr.rel (0) target = $region53
    $region52: #{tpu_custom_call.1} parent=1 // pred_region
      %380 = dma.done [#allocation4], 128
    $region53: #{tpu_custom_call.1} parent=1 // pred_fallthru
      _
    %381 = vsyncpa [#allocation3], 1
    %382 = vsyncpa [#allocation4], 1

</llo_original>
